<compile_context>
chip_gen: v7x
topology: tpu7x:2x2x1
jax: 0.10.0
libtpu: 0.0.40
codegen_flags: <defaults>
</compile_context>

<pallas_src>
import jax
import jax.numpy as jnp
from jax.experimental import pallas as pl
from jax.experimental.pallas import tpu as pltpu


def _aspect_ratio_embed_kernel(ids_ref, x_ref, emb_ref, gate_ref, o_ref):
    # ids_ref : SMEM (B,) int32 -- consumed by the BlockSpec index_maps only.
    # x_ref   : (1, 1, P, H)   hidden_state slab for (batch b, tile t)
    # emb_ref : (1, 1, 1, H)   embedding row selected by aspect_ratio_ids[b], tile t
    # gate_ref: (1, 1)         scalar gate parameter
    del ids_ref
    g = jnp.tanh(gate_ref[...].astype(jnp.float32))            # (1, 1)
    e = emb_ref[...].astype(jnp.float32) * g                   # (1, 1, 1, H)
    x = x_ref[...].astype(jnp.float32)                         # (1, 1, P, H)
    o_ref[...] = (x + e).astype(o_ref.dtype)


def mllama_precomputed_aspect_ratio_embedding(hidden_state, aspect_ratio_ids,
                                              embed_weight, gate):
    """hidden_state (B,T,P,H) + gate.tanh() * embedding[aspect_ratio_ids] (B,T,1,H)."""
    B, T, P, H = hidden_state.shape
    num_ids, emb_dim = embed_weight.shape
    assert emb_dim == T * H, "embedding weight must be (num_ids, max_num_tiles*hidden)"

    ids = aspect_ratio_ids.reshape(-1).astype(jnp.int32)
    assert ids.shape[0] == B, "one aspect_ratio_id per leading hidden_state row"

    # (num_ids, T, 1, H): block (1,1,1,H) has its last two dims equal to the
    # full array dims -> always a legal TPU block; index_map picks (ids[b], t).
    emb4 = embed_weight.reshape(num_ids, T, 1, H)
    gate2 = jnp.asarray(gate).reshape(1, 1)

    out = pl.pallas_call(
        _aspect_ratio_embed_kernel,
        out_shape=jax.ShapeDtypeStruct((B, T, P, H), hidden_state.dtype),
        grid_spec=pltpu.PrefetchScalarGridSpec(
            num_scalar_prefetch=1,
            grid=(B, T),
            in_specs=[
                # hidden_state slab: full (P, H) per (b, t)
                pl.BlockSpec((1, 1, P, H), lambda b, t, ids: (b, t, 0, 0)),
                # embedding row: data-dependent block index via scalar prefetch
                pl.BlockSpec((1, 1, 1, H), lambda b, t, ids: (ids[b], t, 0, 0)),
                # scalar gate (resident, 4 bytes)
                pl.BlockSpec((1, 1), lambda b, t, ids: (0, 0)),
            ],
            out_specs=pl.BlockSpec((1, 1, P, H), lambda b, t, ids: (b, t, 0, 0)),
        ),
        compiler_params=pltpu.CompilerParams(
            dimension_semantics=("parallel", "parallel"),
            vmem_limit_bytes=48 * 1024 * 1024,
        ),
    )(ids, hidden_state, emb4, gate2)
    return out


if __name__ == "__main__":
    # Small synthetic config consistent with the module's shapes.
    batch, max_num_tiles, num_patches, hidden = 2, 4, 8, 32
    max_aspect_ratio_id = 8
    num_ids = max_aspect_ratio_id + 1
    dtype = jnp.float32

    key = jax.random.PRNGKey(0)
    kx, ke, kg, ki = jax.random.split(key, 4)

    hidden_state = jax.random.normal(
        kx, (batch, max_num_tiles, num_patches, hidden), dtype=dtype)
    embed_weight = jax.random.normal(
        ke, (num_ids, max_num_tiles * hidden), dtype=dtype) * 0.02
    gate = jax.random.normal(kg, (), dtype=dtype)
    aspect_ratio_ids = jax.random.randint(ki, (batch,), 0, num_ids, dtype=jnp.int32)

    out = mllama_precomputed_aspect_ratio_embedding(
        hidden_state, aspect_ratio_ids, embed_weight, gate)
    out = jax.block_until_ready(out)

    # Pure-JAX reference of the same semantics.
    emb = embed_weight[aspect_ratio_ids].reshape(batch, max_num_tiles, 1, hidden)
    ref = hidden_state + emb * jnp.tanh(gate)
    assert out.shape == hidden_state.shape
    assert jnp.allclose(out, ref, atol=1e-5, rtol=1e-5)

    print("KERNEL_OK")
</pallas_src>

<mosaic_0001>
module attributes {stable_mosaic.version = 11 : i64} {
  func.func @_aspect_ratio_embed_kernel(%arg0: i32, %arg1: i32, %arg2: memref<2xi32, #tpu.memory_space<smem>>, %arg3: memref<1x1x8x32xf32, #tpu.memory_space<vmem>>, %arg4: memref<1x1x1x32xf32, #tpu.memory_space<vmem>>, %arg5: memref<1x1xf32, #tpu.memory_space<vmem>>, %arg6: memref<1x1x8x32xf32, #tpu.memory_space<vmem>>) attributes {dimension_semantics = [#tpu.dimension_semantics<parallel>, #tpu.dimension_semantics<parallel>], iteration_bounds = array<i64: 2, 4>, scalar_prefetch = 1 : i64, scratch_operands = 0 : i64, tpu.core_type = #tpu.core_type<tc>, window_params = [{transform_indices = @transform_0, window_bounds = array<i64: 1, 1, 8, 32>}, {transform_indices = @transform_1, window_bounds = array<i64: 1, 1, 1, 32>}, {pipeline_mode = #tpu.pipeline_mode<synchronous>, transform_indices = @transform_2, window_bounds = array<i64: 1, 1>}, {transform_indices = @transform_3, window_bounds = array<i64: 1, 1, 8, 32>}]} {
    %c0 = arith.constant 0 : index
    %c0_0 = arith.constant 0 : index
    %0 = vector.load %arg5[%c0, %c0_0] : memref<1x1xf32, #tpu.memory_space<vmem>>, vector<1x1xf32>
    %1 = math.tanh %0 : vector<1x1xf32>
    %c0_1 = arith.constant 0 : index
    %c0_2 = arith.constant 0 : index
    %c0_3 = arith.constant 0 : index
    %c0_4 = arith.constant 0 : index
    %2 = vector.load %arg4[%c0_1, %c0_2, %c0_3, %c0_4] : memref<1x1x1x32xf32, #tpu.memory_space<vmem>>, vector<1x1x1x32xf32>
    %3 = vector.shape_cast %1 : vector<1x1xf32> to vector<1x1x1x1xf32>
    %4 = vector.broadcast %3 : vector<1x1x1x1xf32> to vector<1x1x1x32xf32>
    %5 = arith.mulf %2, %4 : vector<1x1x1x32xf32>
    %c0_5 = arith.constant 0 : index
    %c0_6 = arith.constant 0 : index
    %c0_7 = arith.constant 0 : index
    %c0_8 = arith.constant 0 : index
    %6 = vector.load %arg3[%c0_5, %c0_6, %c0_7, %c0_8] : memref<1x1x8x32xf32, #tpu.memory_space<vmem>>, vector<1x1x8x32xf32>
    %7 = vector.broadcast %5 : vector<1x1x1x32xf32> to vector<1x1x8x32xf32>
    %8 = arith.addf %6, %7 : vector<1x1x8x32xf32>
    %c0_9 = arith.constant 0 : index
    %c0_10 = arith.constant 0 : index
    %c0_11 = arith.constant 0 : index
    %c0_12 = arith.constant 0 : index
    %9 = vector.load %arg6[%c0_9, %c0_10, %c0_11, %c0_12] : memref<1x1x8x32xf32, #tpu.memory_space<vmem>>, vector<1x1x8x32xf32>
    tpu.vector_store %arg6[%c0_9, %c0_10, %c0_11, %c0_12], %8 {strides = array<i32>} : memref<1x1x8x32xf32, #tpu.memory_space<vmem>>, vector<1x1x8x32xf32>,
    return
  }
  func.func @transform_0(%arg0: i32, %arg1: i32, %arg2: memref<2xi32, #tpu.memory_space<smem>>) -> (i32, i32, i32, i32) {
    %c0_i32 = arith.constant 0 : i32
    %c0_i32_0 = arith.constant 0 : i32
    %c0_i32_1 = arith.constant 0 : i32
    return %arg0, %arg1, %c0_i32, %c0_i32_0 : i32, i32, i32, i32
  }
  func.func @transform_1(%arg0: i32, %arg1: i32, %arg2: memref<2xi32, #tpu.memory_space<smem>>) -> (i32, i32, i32, i32) {
    %0 = arith.index_cast %arg0 : i32 to index
    %1 = memref.load %arg2[%0] : memref<2xi32, #tpu.memory_space<smem>>
    %c0_i32 = arith.constant 0 : i32
    %c0_i32_0 = arith.constant 0 : i32
    %c0_i32_1 = arith.constant 0 : i32
    return %1, %arg1, %c0_i32, %c0_i32_0 : i32, i32, i32, i32
  }
  func.func @transform_2(%arg0: i32, %arg1: i32, %arg2: memref<2xi32, #tpu.memory_space<smem>>) -> (i32, i32) {
    %c0_i32 = arith.constant 0 : i32
    %c0_i32_0 = arith.constant 0 : i32
    %c0_i32_1 = arith.constant 0 : i32
    return %c0_i32, %c0_i32_0 : i32, i32
  }
  func.func @transform_3(%arg0: i32, %arg1: i32, %arg2: memref<2xi32, #tpu.memory_space<smem>>) -> (i32, i32, i32, i32) {
    %c0_i32 = arith.constant 0 : i32
    %c0_i32_0 = arith.constant 0 : i32
    %c0_i32_1 = arith.constant 0 : i32
    return %arg0, %arg1, %c0_i32, %c0_i32_0 : i32, i32, i32, i32
  }
}

</mosaic_0001>

<llo_original>
// kernel: tpu_custom_call.1
$region0: #{tpu_custom_call.1}
  #allocation0 [shape = 'u32[]', space=smem, size = 0x4, offset = 0x4, fixed_abs, tag = 'smem constant byte address 0x4 - core index']
  #allocation1 [shape = 'u32[144,128]{1,0:T(1,128)}', space=vmem, size = 0x12000, scoped, tag = 'internal scratch']
  #allocation2 [shape = 's32[1]{0}', space=sflag, size = 0x4, scoped, tag = 'scoped memory for tpu_custom_call.1']
  #allocation3 [shape = 'u8[512]{0}', space=smem, size = 0x200, scoped, tag = 'prefetched SMEM operand 0']
  #allocation4 [shape = 'f32[1,1]{1,0:T(1,128)S(1)}', space=vmem, size = 0x200, scoped, tag = 'scoped memory for tpu_custom_call.1']
  %s0 = inlined_call_operand.vmem [shape: s32[2], index: 0, kind: input, shape index: {}]
  %s1 = inlined_call_operand.hbm [shape: f32[2,4,8,32], index: 1, kind: input, shape index: {}]
  %s2 = inlined_call_operand.hbm [shape: f32[9,4,1,32], index: 2, kind: input, shape index: {}]
  %s3 = inlined_call_operand.<no memory space> [shape: f32[1,1], index: 3, kind: input, shape index: {}]
  %s4 = inlined_call_operand.hbm [shape: f32[2,4,8,32], index: 4, kind: output, shape index: {}]
  %s5 = sld [smem:[#allocation0]]
  $region53: #{tpu_custom_call.1} parent=0
    _
  %s7 = ssub.s32 1, %s5
  %s8 = scalar_select 0, %s7, %s5
  %s9 = sshll.u32 %s0, 4
  %s10 = int_to_ptr.vmem [resolvable:$true] %s9
  %12 = dma.vmem_to_smem %s10, 16, [#allocation3], [#allocation2]
  %v13 = vstv %s3
  %14 = vst [vmem:[#allocation4] sm:$0x1] %v13
  %15 = dma.done [#allocation2], 16
  %16 = sfence
  $region1: #{tpu_custom_call.1} parent=0
    #allocation5 [shape = 'u8[8192]{0}', space=vmem, size = 0x2000, scoped, tag = 'input window, operand 1']
    #allocation6 [shape = 's32[2]{0}', space=sflag, size = 0x8, scoped, tag = 'scoped memory for tpu_custom_call.1']
    #allocation7 [shape = 's32[2]{0}', space=sflag, size = 0x8, scoped, tag = 'scoped memory for tpu_custom_call.1']
    #allocation8 [shape = 'u8[1024]{0}', space=vmem, size = 0x400, scoped, tag = 'input window, operand 2']
    #allocation9 [shape = 's32[2]{0}', space=sflag, size = 0x8, scoped, tag = 'scoped memory for tpu_custom_call.1']
    #allocation10 [shape = 'u8[8192]{0}', space=vmem, size = 0x2000, scoped, tag = 'output window, operand 0']
    %17 = vsyncpa [#allocation6], 0
    %s18 = scalar_lea.sflag [#allocation6], 1
    %19 = vsyncpa %s18, 0
    %20 = vsyncpa [#allocation9], 0
    %s21 = scalar_lea.sflag [#allocation9], 1
    %22 = vsyncpa %s21, 0
    %23 = vsyncpa [#allocation7], 0
    %s24 = scalar_lea.sflag [#allocation7], 1
    %25 = vsyncpa %s24, 0
    loop: start=0, step=1, limit=10
    $region2: #{tpu_custom_call.1} parent=1 // loop_pre_header
      _
    $region3: #{tpu_custom_call.1} parent=1 // loop_header
      %s27 = sphi 0, %s31
      %p28 = scmp.ge.s32.totalorder %s27, 10
      %s34 = sphi 0, %s46
      %s35 = sphi 0, %s42
      %s36 = sphi 0, %s34
      %s37 = sphi 0, %s35
      %s38 = sphi 0, %s36
      %s39 = sphi 0, %s37
      %s51 = sphi 0, %s53
      %s54 = sphi 0, %s51
      %s55 = sphi 0, %s54
      %s71 = sphi 0, %s55
      %s81 = sphi 0, %s83
      %s84 = sphi 0, %s81
      %s85 = sphi 0, %s84
      %s101 = sphi 0, %s85
      %s105 = sphi 0, %s105
      %s107 = sphi 0, %s105
      %s108 = sphi 0, %s107
      %s122 = sphi 0, %s108
      %s130 = sphi 0, %s132
      %s133 = sphi 0, %s130
      %s134 = sphi 0, %s133
      %s150 = sphi 0, %s134
    $region4: #{tpu_custom_call.1} parent=1 // loop_header_branch
      %30 = sbr.rel (%p28) target = $region8
    $region5: #{tpu_custom_call.1} parent=1 // loop_body
      %s32 = ssub.s32 %s27, 1
      %s33 = ssub.s32 %s27, 2
      %s40 = sadd.s32 1, %s35
      %p41 = scmp.ge.s32.totalorder %s40, 4
      %s42 = scalar_select %p41, 0, %s40
      %s43 = sadd.s32 1, %s34
      %s44 = scalar_select %p41, %s43, %s34
      %p45 = scmp.ge.s32.totalorder %s44, 2
      %s46 = scalar_select %p45, 0, %s44
      %s47 = ssub.s32 %s34, %s46
      %s48 = ssub.s32 %s35, %s42
      %s49 = sor.u32 %s47, %s48
      %p50 = scmp.eq.s32.totalorder %s49, 0
      %s52 = sadd.s32 %s51, 1
      %s53 = scalar_select %p50, %s51, %s52
      %p56 = pneg %p50
      %p57 = scmp.eq.s32.totalorder %s27, 7
      %p58 = por %p56, %p57
      %p59 = scmp.ne.s32.totalorder %s51, %s54
      %p60 = scmp.eq.s32.totalorder %s27, 0
      %p61 = por %p59, %p60
      %p62 = scmp.ne.s32.totalorder %s51, %s54
      %p63 = scmp.eq.s32.totalorder %s32, 7
      %p64 = por %p62, %p63
      %p65 = scmp.ne.s32.totalorder %s54, %s55
      %p66 = scmp.eq.s32.totalorder %s32, 0
      %p67 = por %p65, %p66
      %p68 = scmp.ne.s32.totalorder %s54, %s55
      %p69 = scmp.eq.s32.totalorder %s33, 7
      %p70 = por %p68, %p69
      %p72 = scmp.ne.s32.totalorder %s55, %s71
      %p73 = scmp.eq.s32.totalorder %s33, 0
      %p74 = por %p72, %p73
      %s75 = sld [smem:[#allocation3 + %s34]]
      %s76 = sld [smem:[#allocation3 + %s46]]
      %s77 = ssub.s32 %s75, %s76
      %s78 = ssub.s32 %s35, %s42
      %s79 = sor.u32 %s77, %s78
      %p80 = scmp.eq.s32.totalorder %s79, 0
      %s82 = sadd.s32 %s81, 1
      %s83 = scalar_select %p80, %s81, %s82
      %p86 = pneg %p80
      %p87 = scmp.eq.s32.totalorder %s27, 7
      %p88 = por %p86, %p87
      %p89 = scmp.ne.s32.totalorder %s81, %s84
      %p90 = scmp.eq.s32.totalorder %s27, 0
      %p91 = por %p89, %p90
      %p92 = scmp.ne.s32.totalorder %s81, %s84
      %p93 = scmp.eq.s32.totalorder %s32, 7
      %p94 = por %p92, %p93
      %p95 = scmp.ne.s32.totalorder %s84, %s85
      %p96 = scmp.eq.s32.totalorder %s32, 0
      %p97 = por %p95, %p96
      %p98 = scmp.ne.s32.totalorder %s84, %s85
      %p99 = scmp.eq.s32.totalorder %s33, 7
      %p100 = por %p98, %p99
      %p102 = scmp.ne.s32.totalorder %s85, %s101
      %p103 = scmp.eq.s32.totalorder %s33, 0
      %p104 = por %p102, %p103
      %s106 = sadd.s32 %s105, 1
      %p109 = scmp.eq.s32.totalorder %s27, 7
      %p110 = scmp.ne.s32.totalorder %s105, %s107
      %p111 = scmp.eq.s32.totalorder %s27, 0
      %p112 = por %p110, %p111
      %p113 = scmp.ne.s32.totalorder %s105, %s107
      %p114 = scmp.eq.s32.totalorder %s32, 7
      %p115 = por %p113, %p114
      %p116 = scmp.ne.s32.totalorder %s107, %s108
      %p117 = scmp.eq.s32.totalorder %s32, 0
      %p118 = por %p116, %p117
      %p119 = scmp.ne.s32.totalorder %s107, %s108
      %p120 = scmp.eq.s32.totalorder %s33, 7
      %p121 = por %p119, %p120
      %p123 = scmp.ne.s32.totalorder %s108, %s122
      %p124 = scmp.eq.s32.totalorder %s33, 0
      %p125 = por %p123, %p124
      %s126 = ssub.s32 %s34, %s46
      %s127 = ssub.s32 %s35, %s42
      %s128 = sor.u32 %s126, %s127
      %p129 = scmp.eq.s32.totalorder %s128, 0
      %s131 = sadd.s32 %s130, 1
      %s132 = scalar_select %p129, %s130, %s131
      %p135 = pneg %p129
      %p136 = scmp.eq.s32.totalorder %s27, 7
      %p137 = por %p135, %p136
      %p138 = scmp.ne.s32.totalorder %s130, %s133
      %p139 = scmp.eq.s32.totalorder %s27, 0
      %p140 = por %p138, %p139
      %p141 = scmp.ne.s32.totalorder %s130, %s133
      %p142 = scmp.eq.s32.totalorder %s32, 7
      %p143 = por %p141, %p142
      %p144 = scmp.ne.s32.totalorder %s133, %s134
      %p145 = scmp.eq.s32.totalorder %s32, 0
      %p146 = por %p144, %p145
      %p147 = scmp.ne.s32.totalorder %s133, %s134
      %p148 = scmp.eq.s32.totalorder %s33, 7
      %p149 = por %p147, %p148
      %p151 = scmp.ne.s32.totalorder %s134, %s150
      %p152 = scmp.eq.s32.totalorder %s33, 0
      %p153 = por %p151, %p152
      %p154 = scmp.le.s32.totalorder 1, %s27
      %p155 = scmp.lt.s32.totalorder %s27, 9
      %p156 = pnand %p154, %p155
      %p157 = pneg %p156
      // Predicated region
      $region9: #{tpu_custom_call.1} parent=5 // pred_check
        _
      $region10: #{tpu_custom_call.1} parent=5 // pred_check_branch
        %159 = sbr.rel (%p156) target = $region12
      $region11: #{tpu_custom_call.1} parent=5 // pred_region
        %s160 = ssub.s32 %s27, 1
        // Predicated region
        $region13: #{tpu_custom_call.1} parent=11 // pred_check
          %p161 = pneg %p118
        $region14: #{tpu_custom_call.1} parent=11 // pred_check_branch
          %163 = sbr.rel (%p161) target = $region16
        $region15: #{tpu_custom_call.1} parent=11 // pred_region
          _
        $region16: #{tpu_custom_call.1} parent=11 // pred_fallthru
          _
      $region12: #{tpu_custom_call.1} parent=5 // pred_fallthru
        _
      %p164 = scmp.lt.s32.totalorder %s27, 8
      // Predicated region
      $region17: #{tpu_custom_call.1} parent=5 // pred_check
        %p165 = pneg %p164
      $region18: #{tpu_custom_call.1} parent=5 // pred_check_branch
        %167 = sbr.rel (%p165) target = $region20
      $region19: #{tpu_custom_call.1} parent=5 // pred_region
        // Predicated region
        $region21: #{tpu_custom_call.1} parent=19 // pred_check
          %p168 = pneg %p61
        $region22: #{tpu_custom_call.1} parent=19 // pred_check_branch
          %170 = sbr.rel (%p168) target = $region24
        $region23: #{tpu_custom_call.1} parent=19 // pred_region
          %s171 = sand.u32 %s51, 1
          %s172 = scalar_lea.sflag [#allocation6], %s171
          %s173 = sand.u32 %s51, 1
          %s174 = smul.addr %s173, 8
          %s175 = scalar_lea.vmem [#allocation5], %s174
          %s177 = ssub.s32 128, 128
          %178 = vsyncadd %s172, %s177
          %s179 = smul.addr %s34, 4
          %s180 = sadd.s32 %s35, %s179
          %s181 = smul.addr %s180, 128
          %s182 = scalar_lea.hbm %s1, %s181
          %s184 = sshll.u32 %s175, 4
          %s185 = int_to_ptr.vmem [resolvable:$true] %s184
          %187 = dma.hbm_to_vmem [thread:$0]  %s182, 128, %s185, %s172
        $region24: #{tpu_custom_call.1} parent=19 // pred_fallthru
          _
        // Predicated region
        $region25: #{tpu_custom_call.1} parent=19 // pred_check
          %p188 = pneg %p91
        $region26: #{tpu_custom_call.1} parent=19 // pred_check_branch
          %190 = sbr.rel (%p188) target = $region28
        $region27: #{tpu_custom_call.1} parent=19 // pred_region
          %s191 = sand.u32 %s81, 1
          %s192 = scalar_lea.sflag [#allocation9], %s191
          %s193 = sand.u32 %s81, 1
          %s194 = scalar_lea.vmem [#allocation8], %s193
          %s195 = sld [smem:[#allocation3 + %s34]]
          %s197 = ssub.s32 16, 16
          %198 = vsyncadd %s192, %s197
          %s199 = smul.addr %s195, 4
          %s200 = sadd.s32 %s35, %s199
          %s201 = smul.addr %s200, 16
          %s202 = scalar_lea.hbm %s2, %s201
          %s204 = sshll.u32 %s194, 4
          %s205 = int_to_ptr.vmem [resolvable:$true] %s204
          %207 = dma.hbm_to_vmem [thread:$0]  %s202, 16, %s205, %s192
        $region28: #{tpu_custom_call.1} parent=19 // pred_fallthru
          _
      $region20: #{tpu_custom_call.1} parent=5 // pred_fallthru
        _
      %p208 = scmp.le.s32.totalorder 1, %s27
      %p209 = scmp.lt.s32.totalorder %s27, 9
      %p210 = pnand %p208, %p209
      %p211 = pneg %p210
      // Predicated region
      $region29: #{tpu_custom_call.1} parent=5 // pred_check
        _
      $region30: #{tpu_custom_call.1} parent=5 // pred_check_branch
        %213 = sbr.rel (%p210) target = $region32
      $region31: #{tpu_custom_call.1} parent=5 // pred_region
        %s214 = ssub.s32 %s27, 1
        %s215 = sand.u32 %s54, 1
        %s216 = scalar_lea.sflag [#allocation6], %s215
        %s217 = sand.u32 %s54, 1
        %s218 = smul.addr %s217, 8
        %s219 = scalar_lea.vmem [#allocation5], %s218
        // Predicated region
        $region33: #{tpu_custom_call.1} parent=31 // pred_check
          %p220 = pneg %p67
        $region34: #{tpu_custom_call.1} parent=31 // pred_check_branch
          %222 = sbr.rel (%p220) target = $region36
        $region35: #{tpu_custom_call.1} parent=31 // pred_region
          %223 = dma.done %s216, 128
        $region36: #{tpu_custom_call.1} parent=31 // pred_fallthru
          _
        %s224 = sand.u32 %s84, 1
        %s225 = scalar_lea.sflag [#allocation9], %s224
        %s226 = sand.u32 %s84, 1
        %s227 = scalar_lea.vmem [#allocation8], %s226
        // Predicated region
        $region37: #{tpu_custom_call.1} parent=31 // pred_check
          %p228 = pneg %p97
        $region38: #{tpu_custom_call.1} parent=31 // pred_check_branch
          %230 = sbr.rel (%p228) target = $region40
        $region39: #{tpu_custom_call.1} parent=31 // pred_region
          %231 = dma.done %s225, 16
        $region40: #{tpu_custom_call.1} parent=31 // pred_fallthru
          _
        %s232 = sand.u32 %s54, 1
        %s233 = scalar_lea.sflag [#allocation6], %s232
        %s234 = sand.u32 %s54, 1
        %s235 = smul.addr %s234, 8
        %s236 = scalar_lea.vmem [#allocation5], %s235
        %p237 = pneg %p67
        %p238 = pneg %p64
        %s239 = sand.u32 %s84, 1
        %s240 = scalar_lea.sflag [#allocation9], %s239
        %s241 = sand.u32 %s84, 1
        %s242 = scalar_lea.vmem [#allocation8], %s241
        %p243 = pneg %p97
        %p244 = pneg %p94
        %p245 = pneg %p118
        %p246 = pneg %p115
        %p247 = pneg %p146
        %p248 = pneg %p143
        %s249 = sand.u32 %s133, 1
        %s250 = scalar_lea.sflag [#allocation7], %s249
        %s251 = sand.u32 %s133, 1
        %s252 = smul.addr %s251, 8
        %s253 = scalar_lea.vmem [#allocation10], %s252
        %s254 = sld [smem:[#allocation3 + %s36]]
        %v255 = vld [vmem:[#allocation4] sm:$0x1]
        %v256 = vtanh.pop %v255
        %v257 = vld [vmem:[%s227] sm:$0x1]
        %259 = vset.pattern.permute.xlu0 0
        %260 = vperm.xlu0 %259, %v256
        %v261 = vpop.permute.xlu0 %260
        %v263 = vlaneseq
        %v264 = vshrl.u32 %v263, 7
        %v265 = vsub.s32 0, %v264
        %v266 = vrot.slane %v261, %v265
        %v267 = vmul.f32 %v257, %v266
        %v268 = vld [vmem:[%s219] sm:$0xff]
        %v270 = vlaneseq
        %v271 = vshrl.u32 %v270, 7
        %v272 = vsub.s32 0, %v271
        %v273 = vrot.slane %v267, %v272
        %v275 = vadd.f32 %v268, %v273
        %vm276 = vcmask 261120
        %277 = vst.msk [vmem:[%s253] sm:$0xff] %vm276, %v275
        %s278 = sand.u32 %s133, 1
        %s279 = scalar_lea.sflag [#allocation7], %s278
        %s280 = sand.u32 %s133, 1
        %s281 = smul.addr %s280, 8
        %s282 = scalar_lea.vmem [#allocation10], %s281
        // Predicated region
        $region41: #{tpu_custom_call.1} parent=31 // pred_check
          %p283 = pneg %p143
        $region42: #{tpu_custom_call.1} parent=31 // pred_check_branch
          %285 = sbr.rel (%p283) target = $region44
        $region43: #{tpu_custom_call.1} parent=31 // pred_region
          %s287 = ssub.s32 128, 128
          %288 = vsyncadd %s279, %s287
          %s289 = smul.addr %s36, 4
          %s290 = sadd.s32 %s37, %s289
          %s291 = smul.addr %s290, 128
          %s292 = scalar_lea.hbm %s4, %s291
          %s294 = sshll.u32 %s282, 4
          %s295 = int_to_ptr.vmem [resolvable:$true] %s294
          %297 = dma.vmem_to_hbm [thread:$0]  %s295, 128, %s292, %s279
        $region44: #{tpu_custom_call.1} parent=31 // pred_fallthru
          _
      $region32: #{tpu_custom_call.1} parent=5 // pred_fallthru
        _
      %p298 = scmp.le.s32.totalorder 2, %s27
      // Predicated region
      $region45: #{tpu_custom_call.1} parent=5 // pred_check
        %p299 = pneg %p298
      $region46: #{tpu_custom_call.1} parent=5 // pred_check_branch
        %301 = sbr.rel (%p299) target = $region48
      $region47: #{tpu_custom_call.1} parent=5 // pred_region
        %s302 = ssub.s32 %s27, 2
        // Predicated region
        $region49: #{tpu_custom_call.1} parent=47 // pred_check
          %p303 = pneg %p149
        $region50: #{tpu_custom_call.1} parent=47 // pred_check_branch
          %305 = sbr.rel (%p303) target = $region52
        $region51: #{tpu_custom_call.1} parent=47 // pred_region
          %s306 = sand.u32 %s134, 1
          %s307 = scalar_lea.sflag [#allocation7], %s306
          %s308 = sand.u32 %s134, 1
          %s309 = smul.addr %s308, 8
          %s310 = scalar_lea.vmem [#allocation10], %s309
          %311 = dma.done %s307, 128
        $region52: #{tpu_custom_call.1} parent=47 // pred_fallthru
          _
      $region48: #{tpu_custom_call.1} parent=5 // pred_fallthru
        _
    $region6: #{tpu_custom_call.1} parent=1 // loop_footer
      %s31 = sadd.s32 1, %s27
    $region7: #{tpu_custom_call.1} parent=1 // loop_footer_branch
      %26 = sbr.rel target = $region3
    $region8: #{tpu_custom_call.1} parent=1 // loop_exit
      _
    %312 = vsyncpa [#allocation6], 1
    %s313 = scalar_lea.sflag [#allocation6], 1
    %314 = vsyncpa %s313, 1
    %315 = vsyncpa [#allocation9], 1
    %s316 = scalar_lea.sflag [#allocation9], 1
    %317 = vsyncpa %s316, 1
    %318 = vsyncpa [#allocation7], 1
    %s319 = scalar_lea.sflag [#allocation7], 1
    %320 = vsyncpa %s319, 1

</llo_original>
